<compile_context>
chip_gen: v5e
topology: v5e:2x2
jax: 0.10.0
libtpu: 0.0.40
codegen_flags: <defaults>
</compile_context>

<pallas_src>
import functools

import jax
import jax.numpy as jnp
from jax.experimental import pallas as pl
from jax.experimental.pallas import tpu as pltpu


# ----------------------------------------------------------------------------
# Kernel: one (block_rows, D) tile per grid step. Rows are independent.
# ----------------------------------------------------------------------------
def layer_norm_kernel(x_ref, w_ref, b_ref, o_ref, *, eps):
    # Compute in f32 for numerical parity with torch.nn.functional.layer_norm.
    x = x_ref[...].astype(jnp.float32)                       # (rows, D)
    mu = jnp.mean(x, axis=-1, keepdims=True)
    xc = x - mu
    var = jnp.mean(xc * xc, axis=-1, keepdims=True)          # biased variance (torch)
    y = xc * jax.lax.rsqrt(var + eps)
    # weight / bias are pre-cast to f32 in the wrapper -> pure multiply-add.
    y = y * w_ref[...] + b_ref[...]
    o_ref[...] = y.astype(o_ref.dtype)


# ----------------------------------------------------------------------------
# VMEM / tile sizing helpers.
# ----------------------------------------------------------------------------
def _vmem_limit_bytes():
    """~70% of physical per-core VMEM (leaves Mosaic scratch headroom)."""
    try:
        cap = pltpu.get_tpu_info().vmem_capacity_bytes
    except Exception:
        cap = None
    if not cap:
        return 64 * 1024 * 1024          # safe default (fits every generation)
    return int(0.7 * cap)


def _sublane_align(itemsize):
    # Native sublane packing: 8 rows for 32-bit, 16 for 16-bit, 32 for 8-bit.
    if itemsize >= 4:
        return 8
    if itemsize == 2:
        return 16
    return 32


def _pick_block_rows(rows, d, itemsize, vmem_limit, target=512):
    """VMEM-, dtype- and D-aware row-tile size (aligned, >=2 grid steps when possible)."""
    align = _sublane_align(itemsize)
    # Per row of tile: 2x double-buffer * (x + out) * itemsize, plus f32 temporaries
    # inside the kernel. Keep the whole thing under ~50% of the VMEM limit.
    per_row_bytes = d * (4 * itemsize + 4)
    budget_rows = max(align, (vmem_limit // 2) // max(per_row_bytes, 1))
    block_rows = min(target, budget_rows)
    # Guarantee >= 2 grid steps when there is enough work (v7x megacore split +
    # pipeline overlap).
    if rows > align:
        block_rows = min(block_rows, pl.cdiv(rows, 2))
    # Round down to the sublane alignment (never below one aligned tile), and
    # never exceed the row count rounded up to alignment.
    block_rows = max(align, (block_rows // align) * align)
    block_rows = min(block_rows, pl.cdiv(rows, align) * align)
    return block_rows


# ----------------------------------------------------------------------------
# Wrapper: fold leading dims into a row axis, cdiv grid over aligned row tiles.
# ----------------------------------------------------------------------------
def layer_norm_pallas(x, weight, bias=None, *, eps=1e-6, block_rows=None):
    orig_shape = x.shape
    D = orig_shape[-1]
    rows = 1
    for s in orig_shape[:-1]:
        rows *= s
    x2 = x.reshape(rows, D)

    if bias is None:
        # bias=False in the module registers a zero buffer -> add zeros.
        bias = jnp.zeros((D,), jnp.float32)
    # Pre-cast resident params to f32 so the kernel does no per-step converts.
    w2 = weight.astype(jnp.float32).reshape(1, D)
    b2 = bias.astype(jnp.float32).reshape(1, D)

    vmem_limit = _vmem_limit_bytes()
    itemsize = jnp.dtype(x.dtype).itemsize
    if block_rows is None:
        block_rows = _pick_block_rows(rows, D, itemsize, vmem_limit)
    grid = (pl.cdiv(rows, block_rows),)      # partial trailing block is masked by Pallas

    out = pl.pallas_call(
        functools.partial(layer_norm_kernel, eps=eps),
        out_shape=jax.ShapeDtypeStruct((rows, D), x.dtype),
        grid_spec=pltpu.PrefetchScalarGridSpec(
            num_scalar_prefetch=0,
            grid=grid,
            in_specs=[
                pl.BlockSpec((block_rows, D), lambda i: (i, 0)),   # x tile
                pl.BlockSpec((1, D), lambda i: (0, 0)),            # weight (resident, f32)
                pl.BlockSpec((1, D), lambda i: (0, 0)),            # bias   (resident, f32)
            ],
            out_specs=pl.BlockSpec((block_rows, D), lambda i: (i, 0)),
        ),
        compiler_params=pltpu.CompilerParams(
            dimension_semantics=("parallel",),
            vmem_limit_bytes=vmem_limit,
        ),
    )(x2, w2, b2)
    return out.reshape(orig_shape)


# ----------------------------------------------------------------------------
# Pure-JAX reference for correctness checking (mirrors torch layer_norm).
# ----------------------------------------------------------------------------
def layer_norm_ref(x, weight, bias=None, *, eps=1e-6):
    xf = x.astype(jnp.float32)
    mu = jnp.mean(xf, axis=-1, keepdims=True)
    xc = xf - mu
    var = jnp.mean(xc * xc, axis=-1, keepdims=True)
    y = xc * jax.lax.rsqrt(var + eps) * weight.astype(jnp.float32)
    if bias is not None:
        y = y + bias.astype(jnp.float32)
    return y.astype(x.dtype)


if __name__ == "__main__":
    key = jax.random.PRNGKey(0)

    # --- Test 1: lane-dense shape (D multiple of 128), multiple row tiles. ---
    B, N, D = 2, 64, 256                       # rows = 128 -> >=2 grid steps
    kx, kw = jax.random.split(key)
    x = jax.random.normal(kx, (B, N, D), jnp.float32)
    weight = 1.0 + 0.1 * jax.random.normal(kw, (D,), jnp.float32)

    out = layer_norm_pallas(x, weight, eps=1e-6)
    out = jax.block_until_ready(out)
    ref = layer_norm_ref(x, weight, eps=1e-6)
    assert out.shape == x.shape
    assert jnp.allclose(out, ref, atol=1e-5, rtol=1e-5), "mismatch (test 1)"

    # --- Test 2: small, module-style shape (hidden not a multiple of 128),
    #             bias=True variant. ---
    B2, N2, D2 = 2, 8, 32                      # rows = 16
    kx2, kw2, kb2 = jax.random.split(jax.random.fold_in(key, 1), 3)
    x2 = jax.random.normal(kx2, (B2, N2, D2), jnp.float32)
    w2 = 1.0 + 0.1 * jax.random.normal(kw2, (D2,), jnp.float32)
    b2 = 0.1 * jax.random.normal(kb2, (D2,), jnp.float32)

    out2 = layer_norm_pallas(x2, w2, b2, eps=1e-6)
    out2 = jax.block_until_ready(out2)
    ref2 = layer_norm_ref(x2, w2, b2, eps=1e-6)
    assert out2.shape == x2.shape
    assert jnp.allclose(out2, ref2, atol=1e-5, rtol=1e-5), "mismatch (test 2)"

    # --- Test 3: awkward row count (exercises cdiv partial trailing block). ---
    B3, N3, D3 = 3, 5, 128                     # rows = 15, block = 8 -> grid (2,)
    kx3, kw3 = jax.random.split(jax.random.fold_in(key, 2))
    x3 = jax.random.normal(kx3, (B3, N3, D3), jnp.float32)
    w3 = 1.0 + 0.1 * jax.random.normal(kw3, (D3,), jnp.float32)

    out3 = layer_norm_pallas(x3, w3, eps=1e-6)
    out3 = jax.block_until_ready(out3)
    ref3 = layer_norm_ref(x3, w3, eps=1e-6)
    assert out3.shape == x3.shape
    assert jnp.allclose(out3, ref3, atol=1e-5, rtol=1e-5), "mismatch (test 3)"

    # --- Test 4: bfloat16 activations (16-row sublane alignment path). ---
    B4, N4, D4 = 2, 24, 128                    # rows = 48, bf16 -> 16-row tiles
    kx4, kw4 = jax.random.split(jax.random.fold_in(key, 3))
    x4 = jax.random.normal(kx4, (B4, N4, D4), jnp.float32).astype(jnp.bfloat16)
    w4 = (1.0 + 0.1 * jax.random.normal(kw4, (D4,), jnp.float32)).astype(jnp.bfloat16)

    out4 = layer_norm_pallas(x4, w4, eps=1e-6)
    out4 = jax.block_until_ready(out4)
    ref4 = layer_norm_ref(x4, w4, eps=1e-6)
    assert out4.shape == x4.shape and out4.dtype == jnp.bfloat16
    assert jnp.allclose(out4.astype(jnp.float32), ref4.astype(jnp.float32),
                        atol=2e-2, rtol=2e-2), "mismatch (test 4)"

    print("KERNEL_OK")
</pallas_src>

<mosaic_0001>
module attributes {stable_mosaic.version = 11 : i64} {
  func.func @layer_norm_kernel(%arg0: i32, %arg1: memref<64x256xf32, #tpu.memory_space<vmem>>, %arg2: memref<1x256xf32, #tpu.memory_space<vmem>>, %arg3: memref<1x256xf32, #tpu.memory_space<vmem>>, %arg4: memref<64x256xf32, #tpu.memory_space<vmem>>) attributes {dimension_semantics = [#tpu.dimension_semantics<parallel>], iteration_bounds = array<i64: 2>, scalar_prefetch = 0 : i64, scratch_operands = 0 : i64, tpu.core_type = #tpu.core_type<tc>, window_params = [{transform_indices = @transform_0, window_bounds = array<i64: 64, 256>}, {pipeline_mode = #tpu.pipeline_mode<synchronous>, transform_indices = @transform_1, window_bounds = array<i64: 1, 256>}, {pipeline_mode = #tpu.pipeline_mode<synchronous>, transform_indices = @transform_2, window_bounds = array<i64: 1, 256>}, {transform_indices = @transform_3, window_bounds = array<i64: 64, 256>}]} {
    %c0 = arith.constant 0 : index
    %c0_0 = arith.constant 0 : index
    %0 = vector.load %arg1[%c0, %c0_0] : memref<64x256xf32, #tpu.memory_space<vmem>>, vector<64x256xf32>
    %cst = arith.constant dense<0.000000e+00> : vector<64xf32>
    %1 = vector.multi_reduction <add>, %0, %cst [1] : vector<64x256xf32> to vector<64xf32>
    %2 = vector.shape_cast %1 : vector<64xf32> to vector<64x1xf32>
    %cst_1 = arith.constant 2.560000e+02 : f32
    %3 = vector.broadcast %cst_1 : f32 to vector<64x1xf32>
    %4 = arith.divf %2, %3 : vector<64x1xf32>
    %5 = vector.broadcast %4 : vector<64x1xf32> to vector<64x256xf32>
    %6 = arith.subf %0, %5 : vector<64x256xf32>
    %7 = arith.mulf %6, %6 : vector<64x256xf32>
    %cst_2 = arith.constant dense<0.000000e+00> : vector<64xf32>
    %8 = vector.multi_reduction <add>, %7, %cst_2 [1] : vector<64x256xf32> to vector<64xf32>
    %9 = vector.shape_cast %8 : vector<64xf32> to vector<64x1xf32>
    %cst_3 = arith.constant 2.560000e+02 : f32
    %10 = vector.broadcast %cst_3 : f32 to vector<64x1xf32>
    %11 = arith.divf %9, %10 : vector<64x1xf32>
    %cst_4 = arith.constant 9.99999997E-7 : f32
    %12 = vector.broadcast %cst_4 : f32 to vector<64x1xf32>
    %13 = arith.addf %11, %12 : vector<64x1xf32>
    %14 = math.rsqrt %13 : vector<64x1xf32>
    %15 = vector.broadcast %14 : vector<64x1xf32> to vector<64x256xf32>
    %16 = arith.mulf %6, %15 : vector<64x256xf32>
    %c0_5 = arith.constant 0 : index
    %c0_6 = arith.constant 0 : index
    %17 = vector.load %arg2[%c0_5, %c0_6] : memref<1x256xf32, #tpu.memory_space<vmem>>, vector<1x256xf32>
    %18 = vector.broadcast %17 : vector<1x256xf32> to vector<64x256xf32>
    %19 = arith.mulf %16, %18 : vector<64x256xf32>
    %c0_7 = arith.constant 0 : index
    %c0_8 = arith.constant 0 : index
    %20 = vector.load %arg3[%c0_7, %c0_8] : memref<1x256xf32, #tpu.memory_space<vmem>>, vector<1x256xf32>
    %21 = vector.broadcast %20 : vector<1x256xf32> to vector<64x256xf32>
    %22 = arith.addf %19, %21 : vector<64x256xf32>
    %c0_9 = arith.constant 0 : index
    %c0_10 = arith.constant 0 : index
    %23 = vector.load %arg4[%c0_9, %c0_10] : memref<64x256xf32, #tpu.memory_space<vmem>>, vector<64x256xf32>
    tpu.vector_store %arg4[%c0_9, %c0_10], %22 {strides = array<i32>} : memref<64x256xf32, #tpu.memory_space<vmem>>, vector<64x256xf32>,
    return
  }
  func.func @transform_0(%arg0: i32) -> (i32, i32) {
    %c0_i32 = arith.constant 0 : i32
    %c0_i32_0 = arith.constant 0 : i32
    return %arg0, %c0_i32 : i32, i32
  }
  func.func @transform_1(%arg0: i32) -> (i32, i32) {
    %c0_i32 = arith.constant 0 : i32
    %c0_i32_0 = arith.constant 0 : i32
    %c0_i32_1 = arith.constant 0 : i32
    return %c0_i32, %c0_i32_0 : i32, i32
  }
  func.func @transform_2(%arg0: i32) -> (i32, i32) {
    %c0_i32 = arith.constant 0 : i32
    %c0_i32_0 = arith.constant 0 : i32
    %c0_i32_1 = arith.constant 0 : i32
    return %c0_i32, %c0_i32_0 : i32, i32
  }
  func.func @transform_3(%arg0: i32) -> (i32, i32) {
    %c0_i32 = arith.constant 0 : i32
    %c0_i32_0 = arith.constant 0 : i32
    return %arg0, %c0_i32 : i32, i32
  }
}

</mosaic_0001>

<llo_original>
// kernel: tpu_custom_call.1
$region0: #{tpu_custom_call.1}
  #allocation0 [shape = 'u32[]', space=smem, size = 0x4, offset = 0x4, fixed_abs, tag = 'smem constant byte address 0x4 - core index']
  #allocation1 [shape = 'u32[72,128]{1,0:T(1,128)}', space=vmem, size = 0x9000, scoped, tag = 'internal scratch']
  %s0 = inlined_call_operand.hbm [shape: f32[128,256], index: 0, kind: input, shape index: {}]
  %s1 = inlined_call_operand.hbm [shape: f32[1,256], index: 1, kind: input, shape index: {}]
  %s2 = inlined_call_operand.hbm [shape: f32[1,256], index: 2, kind: input, shape index: {}]
  %s3 = inlined_call_operand.hbm [shape: f32[128,256], index: 3, kind: output, shape index: {}]
  %s4 = sld [smem:[#allocation0]]
  $region57: #{tpu_custom_call.1} parent=0
    _
  %s6 = ssub.s32 1, %s4
  %s7 = scalar_select 0, %s6, %s4
  $region1: #{tpu_custom_call.1} parent=0
    #allocation2 [shape = 'u8[131072]{0}', space=vmem, size = 0x20000, scoped, tag = 'input window, operand 0']
    #allocation3 [shape = 's32[2]{0}', space=sflag, size = 0x8, scoped, tag = 'scoped memory for tpu_custom_call.1']
    #allocation4 [shape = 's32[2]{0}', space=sflag, size = 0x8, scoped, tag = 'scoped memory for tpu_custom_call.1']
    #allocation5 [shape = 'u8[1024]{0}', space=vmem, size = 0x400, scoped, tag = 'input window, operand 1, single buffered']
    #allocation6 [shape = 's32[1]{0}', space=sflag, size = 0x4, scoped, tag = 'scoped memory for tpu_custom_call.1']
    #allocation7 [shape = 'u8[1024]{0}', space=vmem, size = 0x400, scoped, tag = 'input window, operand 2, single buffered']
    #allocation8 [shape = 'u8[131072]{0}', space=vmem, size = 0x20000, scoped, tag = 'output window, operand 0']
    %8 = vsyncpa [#allocation3], 0
    %s9 = scalar_lea.sflag [#allocation3], 1
    %10 = vsyncpa %s9, 0
    %11 = vsyncpa [#allocation6], 0
    %12 = vsyncpa [#allocation4], 0
    %s13 = scalar_lea.sflag [#allocation4], 1
    %14 = vsyncpa %s13, 0
    loop: start=0, step=1, limit=4
    $region2: #{tpu_custom_call.1} parent=1 // loop_pre_header
      _
    $region3: #{tpu_custom_call.1} parent=1 // loop_header
      %s16 = sphi 0, %s20
      %p17 = scmp.ge.s32.totalorder %s16, 4
      %s26 = sphi 0, %s28
      %s29 = sphi 0, %s26
      %s30 = sphi 0, %s29
      %s46 = sphi 0, %s30
      %s50 = sphi 0, %s50
      %s52 = sphi 0, %s50
      %s53 = sphi 0, %s52
      %s67 = sphi 0, %s53
      %s71 = sphi 0, %s71
      %s73 = sphi 0, %s71
      %s74 = sphi 0, %s73
      %s88 = sphi 0, %s74
      %s94 = sphi 0, %s96
      %s97 = sphi 0, %s94
      %s98 = sphi 0, %s97
      %s114 = sphi 0, %s98
    $region4: #{tpu_custom_call.1} parent=1 // loop_header_branch
      %19 = sbr.rel (%p17) target = $region8
    $region5: #{tpu_custom_call.1} parent=1 // loop_body
      %s21 = ssub.s32 %s16, 1
      %s22 = ssub.s32 %s16, 2
      %s23 = sadd.s32 %s16, 1
      %s24 = ssub.s32 %s16, %s23
      %p25 = scmp.eq.s32.totalorder %s24, 0
      %s27 = sadd.s32 %s26, 1
      %s28 = scalar_select %p25, %s26, %s27
      %p31 = pneg %p25
      %p32 = scmp.eq.s32.totalorder %s16, 1
      %p33 = por %p31, %p32
      %p34 = scmp.ne.s32.totalorder %s26, %s29
      %p35 = scmp.eq.s32.totalorder %s16, 0
      %p36 = por %p34, %p35
      %p37 = scmp.ne.s32.totalorder %s26, %s29
      %p38 = scmp.eq.s32.totalorder %s21, 1
      %p39 = por %p37, %p38
      %p40 = scmp.ne.s32.totalorder %s29, %s30
      %p41 = scmp.eq.s32.totalorder %s21, 0
      %p42 = por %p40, %p41
      %p43 = scmp.ne.s32.totalorder %s29, %s30
      %p44 = scmp.eq.s32.totalorder %s22, 1
      %p45 = por %p43, %p44
      %p47 = scmp.ne.s32.totalorder %s30, %s46
      %p48 = scmp.eq.s32.totalorder %s22, 0
      %p49 = por %p47, %p48
      %s51 = sadd.s32 %s50, 1
      %p54 = scmp.eq.s32.totalorder %s16, 1
      %p55 = scmp.ne.s32.totalorder %s50, %s52
      %p56 = scmp.eq.s32.totalorder %s16, 0
      %p57 = por %p55, %p56
      %p58 = scmp.ne.s32.totalorder %s50, %s52
      %p59 = scmp.eq.s32.totalorder %s21, 1
      %p60 = por %p58, %p59
      %p61 = scmp.ne.s32.totalorder %s52, %s53
      %p62 = scmp.eq.s32.totalorder %s21, 0
      %p63 = por %p61, %p62
      %p64 = scmp.ne.s32.totalorder %s52, %s53
      %p65 = scmp.eq.s32.totalorder %s22, 1
      %p66 = por %p64, %p65
      %p68 = scmp.ne.s32.totalorder %s53, %s67
      %p69 = scmp.eq.s32.totalorder %s22, 0
      %p70 = por %p68, %p69
      %s72 = sadd.s32 %s71, 1
      %p75 = scmp.eq.s32.totalorder %s16, 1
      %p76 = scmp.ne.s32.totalorder %s71, %s73
      %p77 = scmp.eq.s32.totalorder %s16, 0
      %p78 = por %p76, %p77
      %p79 = scmp.ne.s32.totalorder %s71, %s73
      %p80 = scmp.eq.s32.totalorder %s21, 1
      %p81 = por %p79, %p80
      %p82 = scmp.ne.s32.totalorder %s73, %s74
      %p83 = scmp.eq.s32.totalorder %s21, 0
      %p84 = por %p82, %p83
      %p85 = scmp.ne.s32.totalorder %s73, %s74
      %p86 = scmp.eq.s32.totalorder %s22, 1
      %p87 = por %p85, %p86
      %p89 = scmp.ne.s32.totalorder %s74, %s88
      %p90 = scmp.eq.s32.totalorder %s22, 0
      %p91 = por %p89, %p90
      %s92 = ssub.s32 %s16, %s23
      %p93 = scmp.eq.s32.totalorder %s92, 0
      %s95 = sadd.s32 %s94, 1
      %s96 = scalar_select %p93, %s94, %s95
      %p99 = pneg %p93
      %p100 = scmp.eq.s32.totalorder %s16, 1
      %p101 = por %p99, %p100
      %p102 = scmp.ne.s32.totalorder %s94, %s97
      %p103 = scmp.eq.s32.totalorder %s16, 0
      %p104 = por %p102, %p103
      %p105 = scmp.ne.s32.totalorder %s94, %s97
      %p106 = scmp.eq.s32.totalorder %s21, 1
      %p107 = por %p105, %p106
      %p108 = scmp.ne.s32.totalorder %s97, %s98
      %p109 = scmp.eq.s32.totalorder %s21, 0
      %p110 = por %p108, %p109
      %p111 = scmp.ne.s32.totalorder %s97, %s98
      %p112 = scmp.eq.s32.totalorder %s22, 1
      %p113 = por %p111, %p112
      %p115 = scmp.ne.s32.totalorder %s98, %s114
      %p116 = scmp.eq.s32.totalorder %s22, 0
      %p117 = por %p115, %p116
      %p118 = scmp.le.s32.totalorder 1, %s16
      %p119 = scmp.lt.s32.totalorder %s16, 3
      %p120 = pnand %p118, %p119
      %p121 = pneg %p120
      // Predicated region
      $region9: #{tpu_custom_call.1} parent=5 // pred_check
        _
      $region10: #{tpu_custom_call.1} parent=5 // pred_check_branch
        %123 = sbr.rel (%p120) target = $region12
      $region11: #{tpu_custom_call.1} parent=5 // pred_region
        %s124 = ssub.s32 %s16, 1
        // Predicated region
        $region13: #{tpu_custom_call.1} parent=11 // pred_check
          %p125 = pneg %p63
        $region14: #{tpu_custom_call.1} parent=11 // pred_check_branch
          %127 = sbr.rel (%p125) target = $region16
        $region15: #{tpu_custom_call.1} parent=11 // pred_region
          %129 = vsyncadd [#allocation6], 0
          %s131 = sshll.u32 %s1, 4
          %s132 = int_to_ptr.hbm [resolvable:$true] %s131
          %s133 = sshll.u32 [#allocation5], 4
          %s134 = int_to_ptr.vmem [resolvable:$true] %s133
          %136 = dma.hbm_to_vmem [thread:$0]  %s132, 32, %s134, [#allocation6]
        $region16: #{tpu_custom_call.1} parent=11 // pred_fallthru
          _
        // Predicated region
        $region17: #{tpu_custom_call.1} parent=11 // pred_check
          %p137 = pneg %p84
        $region18: #{tpu_custom_call.1} parent=11 // pred_check_branch
          %139 = sbr.rel (%p137) target = $region20
        $region19: #{tpu_custom_call.1} parent=11 // pred_region
          %141 = vsyncadd [#allocation6], 0
          %s143 = sshll.u32 %s2, 4
          %s144 = int_to_ptr.hbm [resolvable:$true] %s143
          %s145 = sshll.u32 [#allocation7], 4
          %s146 = int_to_ptr.vmem [resolvable:$true] %s145
          %148 = dma.hbm_to_vmem [thread:$0]  %s144, 32, %s146, [#allocation6]
        $region20: #{tpu_custom_call.1} parent=11 // pred_fallthru
          _
      $region12: #{tpu_custom_call.1} parent=5 // pred_fallthru
        _
      %p149 = scmp.lt.s32.totalorder %s16, 2
      // Predicated region
      $region21: #{tpu_custom_call.1} parent=5 // pred_check
        %p150 = pneg %p149
      $region22: #{tpu_custom_call.1} parent=5 // pred_check_branch
        %152 = sbr.rel (%p150) target = $region24
      $region23: #{tpu_custom_call.1} parent=5 // pred_region
        // Predicated region
        $region25: #{tpu_custom_call.1} parent=23 // pred_check
          %p153 = pneg %p36
        $region26: #{tpu_custom_call.1} parent=23 // pred_check_branch
          %155 = sbr.rel (%p153) target = $region28
        $region27: #{tpu_custom_call.1} parent=23 // pred_region
          %s156 = sand.u32 %s26, 1
          %s157 = scalar_lea.sflag [#allocation3], %s156
          %s158 = sand.u32 %s26, 1
          %s159 = smul.addr %s158, 128
          %s160 = scalar_lea.vmem [#allocation2], %s159
          %s161 = smul.u32 8, %s16
          %163 = vsyncadd %s157, 0
          %s164 = smul.addr %s161, 2
          %s165 = smul.addr %s164, 8
          %s166 = scalar_lea.hbm %s0, %s165
          %s167 = sshll.u32 %s166, 4
          %s168 = int_to_ptr.hbm [resolvable:$true] %s167
          %s169 = sshll.u32 %s160, 4
          %s170 = int_to_ptr.vmem [resolvable:$true] %s169
          %175 = dma.hbm_to_vmem [thread:$0]  %s168, 2048, %s170, %s157, 256, 256, 16
        $region28: #{tpu_custom_call.1} parent=23 // pred_fallthru
          _
      $region24: #{tpu_custom_call.1} parent=5 // pred_fallthru
        _
      %p176 = scmp.le.s32.totalorder 1, %s16
      %p177 = scmp.lt.s32.totalorder %s16, 3
      %p178 = pnand %p176, %p177
      %p179 = pneg %p178
      // Predicated region
      $region29: #{tpu_custom_call.1} parent=5 // pred_check
        _
      $region30: #{tpu_custom_call.1} parent=5 // pred_check_branch
        %181 = sbr.rel (%p178) target = $region32
      $region31: #{tpu_custom_call.1} parent=5 // pred_region
        %s182 = ssub.s32 %s16, 1
        %s183 = sand.u32 %s29, 1
        %s184 = scalar_lea.sflag [#allocation3], %s183
        %s185 = sand.u32 %s29, 1
        %s186 = smul.addr %s185, 128
        %s187 = scalar_lea.vmem [#allocation2], %s186
        // Predicated region
        $region33: #{tpu_custom_call.1} parent=31 // pred_check
          %p188 = pneg %p42
        $region34: #{tpu_custom_call.1} parent=31 // pred_check_branch
          %190 = sbr.rel (%p188) target = $region36
        $region35: #{tpu_custom_call.1} parent=31 // pred_region
          %192 = dma.done %s184, 2048
        $region36: #{tpu_custom_call.1} parent=31 // pred_fallthru
          _
        // Predicated region
        $region37: #{tpu_custom_call.1} parent=31 // pred_check
          %p193 = pneg %p63
        $region38: #{tpu_custom_call.1} parent=31 // pred_check_branch
          %195 = sbr.rel (%p193) target = $region40
        $region39: #{tpu_custom_call.1} parent=31 // pred_region
          %197 = dma.done [#allocation6], 32
        $region40: #{tpu_custom_call.1} parent=31 // pred_fallthru
          _
        // Predicated region
        $region41: #{tpu_custom_call.1} parent=31 // pred_check
          %p198 = pneg %p84
        $region42: #{tpu_custom_call.1} parent=31 // pred_check_branch
          %200 = sbr.rel (%p198) target = $region44
        $region43: #{tpu_custom_call.1} parent=31 // pred_region
          %202 = dma.done [#allocation6], 32
        $region44: #{tpu_custom_call.1} parent=31 // pred_fallthru
          _
        %s203 = sand.u32 %s29, 1
        %s204 = scalar_lea.sflag [#allocation3], %s203
        %s205 = sand.u32 %s29, 1
        %s206 = smul.addr %s205, 128
        %s207 = scalar_lea.vmem [#allocation2], %s206
        %p208 = pneg %p42
        %p209 = pneg %p39
        %p210 = pneg %p63
        %p211 = pneg %p60
        %p212 = pneg %p84
        %p213 = pneg %p81
        %p214 = pneg %p110
        %p215 = pneg %p107
        %s216 = sand.u32 %s97, 1
        %s217 = scalar_lea.sflag [#allocation4], %s216
        %s218 = sand.u32 %s97, 1
        %s219 = smul.addr %s218, 128
        %s220 = scalar_lea.vmem [#allocation8], %s219
        %s221 = smul.u32 8, %s21
        %s222 = smul.u32 8, %s21
        %v223 = vld [vmem:[%s187] sm:$0xff]
        %v224 = vld [vmem:[%s187 + $0x8] sm:$0xff]
        %v225 = vld [vmem:[%s187 + $0x10] sm:$0xff]
        %v226 = vld [vmem:[%s187 + $0x18] sm:$0xff]
        %v227 = vld [vmem:[%s187 + $0x20] sm:$0xff]
        %v228 = vld [vmem:[%s187 + $0x28] sm:$0xff]
        %v229 = vld [vmem:[%s187 + $0x30] sm:$0xff]
        %v230 = vld [vmem:[%s187 + $0x38] sm:$0xff]
        %v231 = vld [vmem:[%s187 + $0x40] sm:$0xff]
        %v232 = vld [vmem:[%s187 + $0x48] sm:$0xff]
        %v233 = vld [vmem:[%s187 + $0x50] sm:$0xff]
        %v234 = vld [vmem:[%s187 + $0x58] sm:$0xff]
        %v235 = vld [vmem:[%s187 + $0x60] sm:$0xff]
        %v236 = vld [vmem:[%s187 + $0x68] sm:$0xff]
        %v237 = vld [vmem:[%s187 + $0x70] sm:$0xff]
        %v238 = vld [vmem:[%s187 + $0x78] sm:$0xff]
        %v239 = vadd.f32 %v223, %v224
        %240 = vadd.xlane.f32.xlu0 %v239
        %v241 = vpop.xlane.xlu0 %240
        %v242 = vadd.f32 %v225, %v226
        %243 = vadd.xlane.f32.xlu0 %v242
        %v244 = vpop.xlane.xlu0 %243
        %v245 = vadd.f32 %v227, %v228
        %246 = vadd.xlane.f32.xlu0 %v245
        %v247 = vpop.xlane.xlu0 %246
        %v248 = vadd.f32 %v229, %v230
        %249 = vadd.xlane.f32.xlu0 %v248
        %v250 = vpop.xlane.xlu0 %249
        %v251 = vadd.f32 %v231, %v232
        %252 = vadd.xlane.f32.xlu0 %v251
        %v253 = vpop.xlane.xlu0 %252
        %v254 = vadd.f32 %v233, %v234
        %255 = vadd.xlane.f32.xlu0 %v254
        %v256 = vpop.xlane.xlu0 %255
        %v257 = vadd.f32 %v235, %v236
        %258 = vadd.xlane.f32.xlu0 %v257
        %v259 = vpop.xlane.xlu0 %258
        %v260 = vadd.f32 %v237, %v238
        %261 = vadd.xlane.f32.xlu0 %v260
        %v262 = vpop.xlane.xlu0 %261
        %v263 = vrcp.pop 256.0
        %v264 = vmul.f32 256.0, %v263
        %v265 = vsub.f32 1.0, %v264
        %v266 = vmul.f32 %v263, %v265
        %v267 = vadd.f32 %v263, %v266
        %vm268 = vweird.f32 %v263
        %v269 = vsel %vm268, %v263, %v267
        %v270 = vmul.f32 %v241, %v269
        %v271 = vmul.f32 %v244, %v269
        %v272 = vmul.f32 %v247, %v269
        %v273 = vmul.f32 %v250, %v269
        %v274 = vmul.f32 %v253, %v269
        %v275 = vmul.f32 %v256, %v269
        %v276 = vmul.f32 %v259, %v269
        %v277 = vmul.f32 %v262, %v269
        %v278 = vsub.f32 %v223, %v270
        %v279 = vsub.f32 %v224, %v270
        %v280 = vsub.f32 %v225, %v271
        %v281 = vsub.f32 %v226, %v271
        %v282 = vsub.f32 %v227, %v272
        %v283 = vsub.f32 %v228, %v272
        %v284 = vsub.f32 %v229, %v273
        %v285 = vsub.f32 %v230, %v273
        %v286 = vsub.f32 %v231, %v274
        %v287 = vsub.f32 %v232, %v274
        %v288 = vsub.f32 %v233, %v275
        %v289 = vsub.f32 %v234, %v275
        %v290 = vsub.f32 %v235, %v276
        %v291 = vsub.f32 %v236, %v276
        %v292 = vsub.f32 %v237, %v277
        %v293 = vsub.f32 %v238, %v277
        %v294 = vmul.f32 %v278, %v278
        %v295 = vmul.f32 %v279, %v279
        %v296 = vmul.f32 %v280, %v280
        %v297 = vmul.f32 %v281, %v281
        %v298 = vmul.f32 %v282, %v282
        %v299 = vmul.f32 %v283, %v283
        %v300 = vmul.f32 %v284, %v284
        %v301 = vmul.f32 %v285, %v285
        %v302 = vmul.f32 %v286, %v286
        %v303 = vmul.f32 %v287, %v287
        %v304 = vmul.f32 %v288, %v288
        %v305 = vmul.f32 %v289, %v289
        %v306 = vmul.f32 %v290, %v290
        %v307 = vmul.f32 %v291, %v291
        %v308 = vmul.f32 %v292, %v292
        %v309 = vmul.f32 %v293, %v293
        %v310 = vadd.f32 %v294, %v295
        %311 = vadd.xlane.f32.xlu0 %v310
        %v312 = vpop.xlane.xlu0 %311
        %v313 = vadd.f32 %v296, %v297
        %314 = vadd.xlane.f32.xlu0 %v313
        %v315 = vpop.xlane.xlu0 %314
        %v316 = vadd.f32 %v298, %v299
        %317 = vadd.xlane.f32.xlu0 %v316
        %v318 = vpop.xlane.xlu0 %317
        %v319 = vadd.f32 %v300, %v301
        %320 = vadd.xlane.f32.xlu0 %v319
        %v321 = vpop.xlane.xlu0 %320
        %v322 = vadd.f32 %v302, %v303
        %323 = vadd.xlane.f32.xlu0 %v322
        %v324 = vpop.xlane.xlu0 %323
        %v325 = vadd.f32 %v304, %v305
        %326 = vadd.xlane.f32.xlu0 %v325
        %v327 = vpop.xlane.xlu0 %326
        %v328 = vadd.f32 %v306, %v307
        %329 = vadd.xlane.f32.xlu0 %v328
        %v330 = vpop.xlane.xlu0 %329
        %v331 = vadd.f32 %v308, %v309
        %332 = vadd.xlane.f32.xlu0 %v331
        %v333 = vpop.xlane.xlu0 %332
        %v334 = vmul.f32 %v312, %v269
        %v335 = vmul.f32 %v315, %v269
        %v336 = vmul.f32 %v318, %v269
        %v337 = vmul.f32 %v321, %v269
        %v338 = vmul.f32 %v324, %v269
        %v339 = vmul.f32 %v327, %v269
        %v340 = vmul.f32 %v330, %v269
        %v341 = vmul.f32 %v333, %v269
        %v342 = vadd.f32 %v334, 1e-06
        %v343 = vadd.f32 %v335, 1e-06
        %v344 = vadd.f32 %v336, 1e-06
        %v345 = vadd.f32 %v337, 1e-06
        %v346 = vadd.f32 %v338, 1e-06
        %v347 = vadd.f32 %v339, 1e-06
        %v348 = vadd.f32 %v340, 1e-06
        %v349 = vadd.f32 %v341, 1e-06
        %v350 = vrsqrt.pop %v342
        %v351 = vmul.f32 %v350, %v342
        %v352 = vmul.f32 %v351, %v350
        %v353 = vmul.f32 0.5, %v352
        %v354 = vsub.f32 1.5, %v353
        %v355 = vmul.f32 %v350, %v354
        %vm356 = vweird.f32 %v342
        %vm357 = vweird.f32 %v350
        %vm358 = vmor %vm356, %vm357
        %v359 = vsel %vm358, %v350, %v355
        %v360 = vrsqrt.pop %v343
        %v361 = vmul.f32 %v360, %v343
        %v362 = vmul.f32 %v361, %v360
        %v363 = vmul.f32 0.5, %v362
        %v364 = vsub.f32 1.5, %v363
        %v365 = vmul.f32 %v360, %v364
        %vm366 = vweird.f32 %v343
        %vm367 = vweird.f32 %v360
        %vm368 = vmor %vm366, %vm367
        %v369 = vsel %vm368, %v360, %v365
        %v370 = vrsqrt.pop %v344
        %v371 = vmul.f32 %v370, %v344
        %v372 = vmul.f32 %v371, %v370
        %v373 = vmul.f32 0.5, %v372
        %v374 = vsub.f32 1.5, %v373
        %v375 = vmul.f32 %v370, %v374
        %vm376 = vweird.f32 %v344
        %vm377 = vweird.f32 %v370
        %vm378 = vmor %vm376, %vm377
        %v379 = vsel %vm378, %v370, %v375
        %v380 = vrsqrt.pop %v345
        %v381 = vmul.f32 %v380, %v345
        %v382 = vmul.f32 %v381, %v380
        %v383 = vmul.f32 0.5, %v382
        %v384 = vsub.f32 1.5, %v383
        %v385 = vmul.f32 %v380, %v384
        %vm386 = vweird.f32 %v345
        %vm387 = vweird.f32 %v380
        %vm388 = vmor %vm386, %vm387
        %v389 = vsel %vm388, %v380, %v385
        %v390 = vrsqrt.pop %v346
        %v391 = vmul.f32 %v390, %v346
        %v392 = vmul.f32 %v391, %v390
        %v393 = vmul.f32 0.5, %v392
        %v394 = vsub.f32 1.5, %v393
        %v395 = vmul.f32 %v390, %v394
        %vm396 = vweird.f32 %v346
        %vm397 = vweird.f32 %v390
        %vm398 = vmor %vm396, %vm397
        %v399 = vsel %vm398, %v390, %v395
        %v400 = vrsqrt.pop %v347
        %v401 = vmul.f32 %v400, %v347
        %v402 = vmul.f32 %v401, %v400
        %v403 = vmul.f32 0.5, %v402
        %v404 = vsub.f32 1.5, %v403
        %v405 = vmul.f32 %v400, %v404
        %vm406 = vweird.f32 %v347
        %vm407 = vweird.f32 %v400
        %vm408 = vmor %vm406, %vm407
        %v409 = vsel %vm408, %v400, %v405
        %v410 = vrsqrt.pop %v348
        %v411 = vmul.f32 %v410, %v348
        %v412 = vmul.f32 %v411, %v410
        %v413 = vmul.f32 0.5, %v412
        %v414 = vsub.f32 1.5, %v413
        %v415 = vmul.f32 %v410, %v414
        %vm416 = vweird.f32 %v348
        %vm417 = vweird.f32 %v410
        %vm418 = vmor %vm416, %vm417
        %v419 = vsel %vm418, %v410, %v415
        %v420 = vrsqrt.pop %v349
        %v421 = vmul.f32 %v420, %v349
        %v422 = vmul.f32 %v421, %v420
        %v423 = vmul.f32 0.5, %v422
        %v424 = vsub.f32 1.5, %v423
        %v425 = vmul.f32 %v420, %v424
        %vm426 = vweird.f32 %v349
        %vm427 = vweird.f32 %v420
        %vm428 = vmor %vm426, %vm427
        %v429 = vsel %vm428, %v420, %v425
        %v430 = vmul.f32 %v278, %v359
        %v431 = vmul.f32 %v279, %v359
        %v432 = vmul.f32 %v280, %v369
        %v433 = vmul.f32 %v281, %v369
        %v434 = vmul.f32 %v282, %v379
        %v435 = vmul.f32 %v283, %v379
        %v436 = vmul.f32 %v284, %v389
        %v437 = vmul.f32 %v285, %v389
        %v438 = vmul.f32 %v286, %v399
        %v439 = vmul.f32 %v287, %v399
        %v440 = vmul.f32 %v288, %v409
        %v441 = vmul.f32 %v289, %v409
        %v442 = vmul.f32 %v290, %v419
        %v443 = vmul.f32 %v291, %v419
        %v444 = vmul.f32 %v292, %v429
        %v445 = vmul.f32 %v293, %v429
        %v446 = vld [vmem:[#allocation5] sm:$0x3]
        %v448 = vperm.slane %v446, 0
        %v449 = vperm.slane %v446, 1
        %v452 = vmul.f32 %v430, %v448
        %v453 = vmul.f32 %v431, %v449
        %v454 = vmul.f32 %v432, %v448
        %v455 = vmul.f32 %v433, %v449
        %v456 = vmul.f32 %v434, %v448
        %v457 = vmul.f32 %v435, %v449
        %v458 = vmul.f32 %v436, %v448
        %v459 = vmul.f32 %v437, %v449
        %v460 = vmul.f32 %v438, %v448
        %v461 = vmul.f32 %v439, %v449
        %v462 = vmul.f32 %v440, %v448
        %v463 = vmul.f32 %v441, %v449
        %v464 = vmul.f32 %v442, %v448
        %v465 = vmul.f32 %v443, %v449
        %v466 = vmul.f32 %v444, %v448
        %v467 = vmul.f32 %v445, %v449
        %v468 = vld [vmem:[#allocation7] sm:$0x3]
        %v470 = vperm.slane %v468, 0
        %v471 = vperm.slane %v468, 1
        %v474 = vadd.f32 %v452, %v470
        %v475 = vadd.f32 %v453, %v471
        %v476 = vadd.f32 %v454, %v470
        %v477 = vadd.f32 %v455, %v471
        %v478 = vadd.f32 %v456, %v470
        %v479 = vadd.f32 %v457, %v471
        %v480 = vadd.f32 %v458, %v470
        %v481 = vadd.f32 %v459, %v471
        %v482 = vadd.f32 %v460, %v470
        %v483 = vadd.f32 %v461, %v471
        %v484 = vadd.f32 %v462, %v470
        %v485 = vadd.f32 %v463, %v471
        %v486 = vadd.f32 %v464, %v470
        %v487 = vadd.f32 %v465, %v471
        %v488 = vadd.f32 %v466, %v470
        %v489 = vadd.f32 %v467, %v471
        %490 = vst [vmem:[%s220] sm:$0xff] %v474
        %491 = vst [vmem:[%s220 + $0x8] sm:$0xff] %v475
        %492 = vst [vmem:[%s220 + $0x10] sm:$0xff] %v476
        %493 = vst [vmem:[%s220 + $0x18] sm:$0xff] %v477
        %494 = vst [vmem:[%s220 + $0x20] sm:$0xff] %v478
        %495 = vst [vmem:[%s220 + $0x28] sm:$0xff] %v479
        %496 = vst [vmem:[%s220 + $0x30] sm:$0xff] %v480
        %497 = vst [vmem:[%s220 + $0x38] sm:$0xff] %v481
        %498 = vst [vmem:[%s220 + $0x40] sm:$0xff] %v482
        %499 = vst [vmem:[%s220 + $0x48] sm:$0xff] %v483
        %500 = vst [vmem:[%s220 + $0x50] sm:$0xff] %v484
        %501 = vst [vmem:[%s220 + $0x58] sm:$0xff] %v485
        %502 = vst [vmem:[%s220 + $0x60] sm:$0xff] %v486
        %503 = vst [vmem:[%s220 + $0x68] sm:$0xff] %v487
        %504 = vst [vmem:[%s220 + $0x70] sm:$0xff] %v488
        %505 = vst [vmem:[%s220 + $0x78] sm:$0xff] %v489
        %s506 = sand.u32 %s97, 1
        %s507 = scalar_lea.sflag [#allocation4], %s506
        %s508 = sand.u32 %s97, 1
        %s509 = smul.addr %s508, 128
        %s510 = scalar_lea.vmem [#allocation8], %s509
        // Predicated region
        $region45: #{tpu_custom_call.1} parent=31 // pred_check
          %p511 = pneg %p107
        $region46: #{tpu_custom_call.1} parent=31 // pred_check_branch
          %513 = sbr.rel (%p511) target = $region48
        $region47: #{tpu_custom_call.1} parent=31 // pred_region
          %s514 = smul.u32 8, %s21
          %516 = vsyncadd %s507, 0
          %s517 = smul.addr %s514, 2
          %s518 = smul.addr %s517, 8
          %s519 = scalar_lea.hbm %s3, %s518
          %s520 = sshll.u32 %s510, 4
          %s521 = int_to_ptr.vmem [resolvable:$true] %s520
          %s522 = sshll.u32 %s519, 4
          %s523 = int_to_ptr.hbm [resolvable:$true] %s522
          %528 = dma.vmem_to_hbm [thread:$0]  %s521, 2048, %s523, %s507, 256, 256, 16
        $region48: #{tpu_custom_call.1} parent=31 // pred_fallthru
          _
      $region32: #{tpu_custom_call.1} parent=5 // pred_fallthru
        _
      %p529 = scmp.le.s32.totalorder 2, %s16
      // Predicated region
      $region49: #{tpu_custom_call.1} parent=5 // pred_check
        %p530 = pneg %p529
      $region50: #{tpu_custom_call.1} parent=5 // pred_check_branch
        %532 = sbr.rel (%p530) target = $region52
      $region51: #{tpu_custom_call.1} parent=5 // pred_region
        %s533 = ssub.s32 %s16, 2
        // Predicated region
        $region53: #{tpu_custom_call.1} parent=51 // pred_check
          %p534 = pneg %p113
        $region54: #{tpu_custom_call.1} parent=51 // pred_check_branch
          %536 = sbr.rel (%p534) target = $region56
        $region55: #{tpu_custom_call.1} parent=51 // pred_region
          %s537 = sand.u32 %s98, 1
          %s538 = scalar_lea.sflag [#allocation4], %s537
          %s539 = sand.u32 %s98, 1
          %s540 = smul.addr %s539, 128
          %s541 = scalar_lea.vmem [#allocation8], %s540
          %543 = dma.done %s538, 2048
        $region56: #{tpu_custom_call.1} parent=51 // pred_fallthru
          _
      $region52: #{tpu_custom_call.1} parent=5 // pred_fallthru
        _
    $region6: #{tpu_custom_call.1} parent=1 // loop_footer
      %s20 = sadd.s32 1, %s16
    $region7: #{tpu_custom_call.1} parent=1 // loop_footer_branch
      %15 = sbr.rel target = $region3
    $region8: #{tpu_custom_call.1} parent=1 // loop_exit
      _
    %544 = vsyncpa [#allocation3], 1
    %s545 = scalar_lea.sflag [#allocation3], 1
    %546 = vsyncpa %s545, 1
    %547 = vsyncpa [#allocation6], 1
    %548 = vsyncpa [#allocation4], 1
    %s549 = scalar_lea.sflag [#allocation4], 1
    %550 = vsyncpa %s549, 1

</llo_original>
